<compile_context>
chip_gen: v7x
topology: tpu7x:2x2x1
jax: 0.10.0
libtpu: 0.0.40
codegen_flags: <defaults>
</compile_context>

<pallas_src>
import functools
import math

import jax
import jax.numpy as jnp
from jax.experimental import pallas as pl
from jax.experimental.pallas import tpu as pltpu

HIDDEN = 128   # hidden width of the DQN MLP (fixed by the PyTorch module)
LANE = 128
ROW_ALIGN = 16  # bf16 packs 16 rows per vreg


def _round_up(n: int, m: int) -> int:
    return ((n + m - 1) // m) * m


def _next_pow2(n: int) -> int:
    return 1 << (max(1, n) - 1).bit_length()


def _bucket_batch(batch: int) -> int:
    """Bucket the batch size so the jitted core sees few distinct shapes."""
    if batch <= ROW_ALIGN:
        return ROW_ALIGN
    if batch <= 1024:
        return _next_pow2(batch)
    return _round_up(batch, 1024)


def _dqn_mlp_kernel(x_ref, w1_ref, b1_ref, w2_ref, b2_ref, w3_ref, b3_ref, o_ref):
    # x arrives f32; cast to bf16 in-kernel (no host-side cast pass over x).
    x = x_ref[...].astype(jnp.bfloat16)
    # layer 1: Linear(din, 128) + ReLU   (bf16 operands, f32 accumulate)
    h1 = jnp.dot(x, w1_ref[...], preferred_element_type=jnp.float32)
    h1 = jnp.maximum(h1 + b1_ref[...], 0.0).astype(jnp.bfloat16)
    # layer 2: Linear(128, 128) + ReLU
    h2 = jnp.dot(h1, w2_ref[...], preferred_element_type=jnp.float32)
    h2 = jnp.maximum(h2 + b2_ref[...], 0.0).astype(jnp.bfloat16)
    # layer 3: Linear(128, dout_padded), no activation
    y = jnp.dot(h2, w3_ref[...], preferred_element_type=jnp.float32) + b3_ref[...]
    o_ref[...] = y.astype(o_ref.dtype)


def prepare_params(params):
    """One-time parameter prep (call once, reuse every forward):
    - weights -> bf16, shape (in_features, out_features)
    - biases  -> f32, shape (1, N)
    - output dim of w3/b3 zero-padded to a multiple of 128 (lane-dense output).
    """
    w1 = params["w1"].astype(jnp.bfloat16)                    # (din, 128)
    w2 = params["w2"].astype(jnp.bfloat16)                    # (128, 128)
    w3 = params["w3"].astype(jnp.float32)                     # (128, dout)
    dout = w3.shape[1]
    doutp = _round_up(dout, LANE)
    w3p = (jnp.zeros((HIDDEN, doutp), jnp.float32)
           .at[:, :dout].set(w3).astype(jnp.bfloat16))
    b3p = jnp.zeros((1, doutp), jnp.float32).at[0, :dout].set(
        params["b3"].astype(jnp.float32))
    return {
        "w1": w1,
        "b1": params["b1"].astype(jnp.float32).reshape(1, HIDDEN),
        "w2": w2,
        "b2": params["b2"].astype(jnp.float32).reshape(1, HIDDEN),
        "w3": w3p,
        "b3": b3p,
    }


def _resident_spec(shape, single_buffer: bool) -> pl.BlockSpec:
    """Weights/biases: same block every grid step -> VMEM-resident.

    Single-buffering (pl.Buffered(1)) halves their VMEM footprint and removes
    the useless second prologue DMA; falls back cleanly if this jax version
    does not accept the pipeline_mode kwarg.
    """
    idx = lambda i: (0, 0)
    if single_buffer:
        try:
            return pl.BlockSpec(shape, idx, pipeline_mode=pl.Buffered(1))
        except TypeError:
            pass
    return pl.BlockSpec(shape, idx)


@functools.partial(
    jax.jit, static_argnames=("tm", "out_dtype", "single_buffer_weights"))
def _dqn_forward_padded(xp, prep, *, tm: int = 1024,
                        out_dtype=jnp.bfloat16,
                        single_buffer_weights: bool = True):
    """Core fused forward on a batch-bucketed x.

    xp:   (bp, din) float32, bp a multiple of 16
    prep: output of prepare_params()
    returns (bp, dout_padded_to_128) out_dtype
    """
    bp, din = xp.shape
    doutp = prep["w3"].shape[1]

    # Batch tile: big (default 1024 rows) to amortize the ~0.35 us per-step
    # overhead, multiple of 16 for clean bf16 row packing, and a divisor of bp.
    tm = max(ROW_ALIGN, (tm // ROW_ALIGN) * ROW_ALIGN)
    tile_m = min(tm, bp)
    if bp % tile_m != 0:
        tile_m = max(ROW_ALIGN, math.gcd(bp, tile_m))
    if bp >= 1024:
        # >=2 grid steps so the "parallel" batch axis can shard across v7x's
        # 2 TensorCores (no-op on v5e/v6e).
        tile_m = min(tile_m, bp // 2)

    grid = (bp // tile_m,)

    flops = 2 * bp * (din * HIDDEN + HIDDEN * HIDDEN + HIDDEN * doutp)
    bytes_accessed = (
        bp * din * 4                                              # x (f32)
        + (din * HIDDEN + HIDDEN * HIDDEN + HIDDEN * doutp) * 2   # weights (bf16)
        + (2 * HIDDEN + doutp) * 4                                # biases (f32)
        + bp * doutp * jnp.dtype(out_dtype).itemsize              # out
    )

    return pl.pallas_call(
        _dqn_mlp_kernel,
        out_shape=jax.ShapeDtypeStruct((bp, doutp), out_dtype),
        grid=grid,
        in_specs=[
            pl.BlockSpec((tile_m, din), lambda i: (i, 0)),              # x tile
            _resident_spec((din, HIDDEN), single_buffer_weights),       # w1
            _resident_spec((1, HIDDEN), single_buffer_weights),         # b1
            _resident_spec((HIDDEN, HIDDEN), single_buffer_weights),    # w2
            _resident_spec((1, HIDDEN), single_buffer_weights),         # b2
            _resident_spec((HIDDEN, doutp), single_buffer_weights),     # w3
            _resident_spec((1, doutp), single_buffer_weights),          # b3
        ],
        out_specs=pl.BlockSpec((tile_m, doutp), lambda i: (i, 0)),
        compiler_params=pltpu.CompilerParams(
            dimension_semantics=("parallel",),
        ),
        cost_estimate=pl.CostEstimate(
            flops=flops, transcendentals=0, bytes_accessed=bytes_accessed),
    )(xp, prep["w1"], prep["b1"], prep["w2"], prep["b2"], prep["w3"], prep["b3"])


def dqn_forward(x, prep, *, output_dim: int, tm: int = 1024,
                out_dtype=jnp.bfloat16, return_padded: bool = False,
                single_buffer_weights: bool = True):
    """Fused DQN policy-net forward.

    x: (batch, input_dim) float32
    prep: output of prepare_params()
    returns (batch, output_dim) out_dtype, or the padded (bucket, 128) buffer
    when return_padded=True (padded columns are exact zeros -- mask them before
    any argmax over Q-values).
    """
    batch = x.shape[0]
    bp = _bucket_batch(batch)                      # bucketed OUTSIDE jit: no per-batch recompiles
    xp = x if bp == batch else jnp.pad(x, ((0, bp - batch), (0, 0)))
    out_p = _dqn_forward_padded(xp, prep, tm=tm, out_dtype=out_dtype,
                                single_buffer_weights=single_buffer_weights)
    if return_padded:
        return out_p
    return out_p[:batch, :output_dim]


def init_dqn_params(key, input_dim: int, output_dim: int, hidden: int = HIDDEN):
    """PyTorch-style init: U(-1/sqrt(fan_in), 1/sqrt(fan_in)), weights (in, out)."""
    ks = jax.random.split(key, 6)

    def linear(kw, kb, fan_in, fan_out):
        bound = 1.0 / jnp.sqrt(jnp.float32(fan_in))
        w = jax.random.uniform(kw, (fan_in, fan_out), jnp.float32, -bound, bound)
        b = jax.random.uniform(kb, (fan_out,), jnp.float32, -bound, bound)
        return w, b

    w1, b1 = linear(ks[0], ks[1], input_dim, hidden)
    w2, b2 = linear(ks[2], ks[3], hidden, hidden)
    w3, b3 = linear(ks[4], ks[5], hidden, output_dim)
    return {"w1": w1, "b1": b1, "w2": w2, "b2": b2, "w3": w3, "b3": b3}


def _reference_forward(x, prep, output_dim, out_dtype=jnp.bfloat16):
    """Pure-JAX reference mirroring the kernel's bf16 operand / f32 accumulate math."""
    f32 = jnp.float32
    xb = x.astype(jnp.bfloat16).astype(f32)
    h1 = jnp.maximum(xb @ prep["w1"].astype(f32) + prep["b1"], 0.0)
    h1 = h1.astype(jnp.bfloat16).astype(f32)
    h2 = jnp.maximum(h1 @ prep["w2"].astype(f32) + prep["b2"], 0.0)
    h2 = h2.astype(jnp.bfloat16).astype(f32)
    y = h2 @ prep["w3"].astype(f32) + prep["b3"]
    return y[:, :output_dim].astype(out_dtype)


# TODO(synk): ReplayMemory, epsilon-greedy select_action and the AdamW
# optimize_model training step are host-side RL plumbing with no Pallas
# equivalent; only the policy_net forward pass is implemented here.

if __name__ == "__main__":
    key = jax.random.PRNGKey(0)
    k_params, k_x = jax.random.split(key)

    batch, input_dim, output_dim = 2, 16, 4
    params = init_dqn_params(k_params, input_dim, output_dim)
    prep = prepare_params(params)                 # one-time, out of the hot path
    x = jax.random.normal(k_x, (batch, input_dim), jnp.float32)

    try:
        out = dqn_forward(x, prep, output_dim=output_dim)
    except Exception:
        # Single-buffered resident weights not supported on this jax version;
        # fall back to default double-buffering.
        out = dqn_forward(x, prep, output_dim=output_dim,
                          single_buffer_weights=False)
    out = jax.block_until_ready(out)

    ref = _reference_forward(x, prep, output_dim)
    assert out.shape == (batch, output_dim)
    assert jnp.allclose(out.astype(jnp.float32), ref.astype(jnp.float32),
                        atol=2e-2, rtol=2e-2), "mismatch vs. reference"

    print("KERNEL_OK")
</pallas_src>

<mosaic_0001>
module attributes {stable_mosaic.version = 11 : i64} {
  func.func @_dqn_mlp_kernel(%arg0: i32, %arg1: memref<16x16xf32, #tpu.memory_space<vmem>>, %arg2: memref<16x128xbf16, #tpu.memory_space<vmem>>, %arg3: memref<1x128xf32, #tpu.memory_space<vmem>>, %arg4: memref<128x128xbf16, #tpu.memory_space<vmem>>, %arg5: memref<1x128xf32, #tpu.memory_space<vmem>>, %arg6: memref<128x128xbf16, #tpu.memory_space<vmem>>, %arg7: memref<1x128xf32, #tpu.memory_space<vmem>>, %arg8: memref<16x128xbf16, #tpu.memory_space<vmem>>) attributes {dimension_semantics = [#tpu.dimension_semantics<parallel>], iteration_bounds = array<i64: 1>, scalar_prefetch = 0 : i64, scratch_operands = 0 : i64, tpu.core_type = #tpu.core_type<tc>, window_params = [{transform_indices = @transform_0, window_bounds = array<i64: 16, 16>}, {pipeline_mode = #tpu.pipeline_mode<synchronous>, transform_indices = @transform_1, window_bounds = array<i64: 16, 128>}, {pipeline_mode = #tpu.pipeline_mode<synchronous>, transform_indices = @transform_2, window_bounds = array<i64: 1, 128>}, {pipeline_mode = #tpu.pipeline_mode<synchronous>, transform_indices = @transform_3, window_bounds = array<i64: 128, 128>}, {pipeline_mode = #tpu.pipeline_mode<synchronous>, transform_indices = @transform_4, window_bounds = array<i64: 1, 128>}, {pipeline_mode = #tpu.pipeline_mode<synchronous>, transform_indices = @transform_5, window_bounds = array<i64: 128, 128>}, {pipeline_mode = #tpu.pipeline_mode<synchronous>, transform_indices = @transform_6, window_bounds = array<i64: 1, 128>}, {transform_indices = @transform_7, window_bounds = array<i64: 16, 128>}]} {
    %c0 = arith.constant 0 : index
    %c0_0 = arith.constant 0 : index
    %0 = vector.load %arg1[%c0, %c0_0] : memref<16x16xf32, #tpu.memory_space<vmem>>, vector<16x16xf32>
    %1 = arith.truncf %0 : vector<16x16xf32> to vector<16x16xbf16>
    %c0_1 = arith.constant 0 : index
    %c0_2 = arith.constant 0 : index
    %2 = vector.load %arg2[%c0_1, %c0_2] : memref<16x128xbf16, #tpu.memory_space<vmem>>, vector<16x128xbf16>
    %cst = arith.constant dense<0.000000e+00> : vector<16x128xf32>
    %3 = tpu.matmul %1, %2, %cst {dimension_numbers = #tpu.dot_dimension_numbers<[1], [0], [0], [1], [0, 0, 1, 1], [], []>} : vector<16x16xbf16>, vector<16x128xbf16>, vector<16x128xf32> -> vector<16x128xf32>
    %c0_3 = arith.constant 0 : index
    %c0_4 = arith.constant 0 : index
    %4 = vector.load %arg3[%c0_3, %c0_4] : memref<1x128xf32, #tpu.memory_space<vmem>>, vector<1x128xf32>
    %5 = vector.broadcast %4 : vector<1x128xf32> to vector<16x128xf32>
    %6 = arith.addf %3, %5 : vector<16x128xf32>
    %cst_5 = arith.constant 0.000000e+00 : f32
    %7 = vector.broadcast %cst_5 : f32 to vector<16x128xf32>
    %8 = arith.maximumf %6, %7 : vector<16x128xf32>
    %9 = arith.truncf %8 : vector<16x128xf32> to vector<16x128xbf16>
    %c0_6 = arith.constant 0 : index
    %c0_7 = arith.constant 0 : index
    %10 = vector.load %arg4[%c0_6, %c0_7] : memref<128x128xbf16, #tpu.memory_space<vmem>>, vector<128x128xbf16>
    %cst_8 = arith.constant dense<0.000000e+00> : vector<16x128xf32>
    %11 = tpu.matmul %9, %10, %cst_8 {dimension_numbers = #tpu.dot_dimension_numbers<[1], [0], [0], [1], [0, 0, 1, 1], [], []>} : vector<16x128xbf16>, vector<128x128xbf16>, vector<16x128xf32> -> vector<16x128xf32>
    %c0_9 = arith.constant 0 : index
    %c0_10 = arith.constant 0 : index
    %12 = vector.load %arg5[%c0_9, %c0_10] : memref<1x128xf32, #tpu.memory_space<vmem>>, vector<1x128xf32>
    %13 = vector.broadcast %12 : vector<1x128xf32> to vector<16x128xf32>
    %14 = arith.addf %11, %13 : vector<16x128xf32>
    %cst_11 = arith.constant 0.000000e+00 : f32
    %15 = vector.broadcast %cst_11 : f32 to vector<16x128xf32>
    %16 = arith.maximumf %14, %15 : vector<16x128xf32>
    %17 = arith.truncf %16 : vector<16x128xf32> to vector<16x128xbf16>
    %c0_12 = arith.constant 0 : index
    %c0_13 = arith.constant 0 : index
    %18 = vector.load %arg6[%c0_12, %c0_13] : memref<128x128xbf16, #tpu.memory_space<vmem>>, vector<128x128xbf16>
    %cst_14 = arith.constant dense<0.000000e+00> : vector<16x128xf32>
    %19 = tpu.matmul %17, %18, %cst_14 {dimension_numbers = #tpu.dot_dimension_numbers<[1], [0], [0], [1], [0, 0, 1, 1], [], []>} : vector<16x128xbf16>, vector<128x128xbf16>, vector<16x128xf32> -> vector<16x128xf32>
    %c0_15 = arith.constant 0 : index
    %c0_16 = arith.constant 0 : index
    %20 = vector.load %arg7[%c0_15, %c0_16] : memref<1x128xf32, #tpu.memory_space<vmem>>, vector<1x128xf32>
    %21 = vector.broadcast %20 : vector<1x128xf32> to vector<16x128xf32>
    %22 = arith.addf %19, %21 : vector<16x128xf32>
    %23 = arith.truncf %22 : vector<16x128xf32> to vector<16x128xbf16>
    %c0_17 = arith.constant 0 : index
    %c0_18 = arith.constant 0 : index
    %24 = vector.load %arg8[%c0_17, %c0_18] : memref<16x128xbf16, #tpu.memory_space<vmem>>, vector<16x128xbf16>
    tpu.vector_store %arg8[%c0_17, %c0_18], %23 {strides = array<i32>} : memref<16x128xbf16, #tpu.memory_space<vmem>>, vector<16x128xbf16>,
    return
  }
  func.func @transform_0(%arg0: i32) -> (i32, i32) {
    %c0_i32 = arith.constant 0 : i32
    %c0_i32_0 = arith.constant 0 : i32
    return %arg0, %c0_i32 : i32, i32
  }
  func.func @transform_1(%arg0: i32) -> (i32, i32) {
    %c0_i32 = arith.constant 0 : i32
    %c0_i32_0 = arith.constant 0 : i32
    %c0_i32_1 = arith.constant 0 : i32
    return %c0_i32, %c0_i32_0 : i32, i32
  }
  func.func @transform_2(%arg0: i32) -> (i32, i32) {
    %c0_i32 = arith.constant 0 : i32
    %c0_i32_0 = arith.constant 0 : i32
    %c0_i32_1 = arith.constant 0 : i32
    return %c0_i32, %c0_i32_0 : i32, i32
  }
  func.func @transform_3(%arg0: i32) -> (i32, i32) {
    %c0_i32 = arith.constant 0 : i32
    %c0_i32_0 = arith.constant 0 : i32
    %c0_i32_1 = arith.constant 0 : i32
    return %c0_i32, %c0_i32_0 : i32, i32
  }
  func.func @transform_4(%arg0: i32) -> (i32, i32) {
    %c0_i32 = arith.constant 0 : i32
    %c0_i32_0 = arith.constant 0 : i32
    %c0_i32_1 = arith.constant 0 : i32
    return %c0_i32, %c0_i32_0 : i32, i32
  }
  func.func @transform_5(%arg0: i32) -> (i32, i32) {
    %c0_i32 = arith.constant 0 : i32
    %c0_i32_0 = arith.constant 0 : i32
    %c0_i32_1 = arith.constant 0 : i32
    return %c0_i32, %c0_i32_0 : i32, i32
  }
  func.func @transform_6(%arg0: i32) -> (i32, i32) {
    %c0_i32 = arith.constant 0 : i32
    %c0_i32_0 = arith.constant 0 : i32
    %c0_i32_1 = arith.constant 0 : i32
    return %c0_i32, %c0_i32_0 : i32, i32
  }
  func.func @transform_7(%arg0: i32) -> (i32, i32) {
    %c0_i32 = arith.constant 0 : i32
    %c0_i32_0 = arith.constant 0 : i32
    return %arg0, %c0_i32 : i32, i32
  }
}

module attributes {stable_mosaic.version = 11 : i64} {
  func.func @_dqn_mlp_kernel(%arg0: i32, %arg1: memref<16x16xf32, #tpu.memory_space<vmem>>, %arg2: memref<16x128xbf16, #tpu.memory_space<vmem>>, %arg3: memref<1x128xf32, #tpu.memory_space<vmem>>, %arg4: memref<128x128xbf16, #tpu.memory_space<vmem>>, %arg5: memref<1x128xf32, #tpu.memory_space<vmem>>, %arg6: memref<128x128xbf16, #tpu.memory_space<vmem>>, %arg7: memref<1x128xf32, #tpu.memory_space<vmem>>, %arg8: memref<16x128xbf16, #tpu.memory_space<vmem>>) attributes {dimension_semantics = [#tpu.dimension_semantics<parallel>], iteration_bounds = array<i64: 1>, scalar_prefetch = 0 : i64, scratch_operands = 0 : i64, tpu.core_type = #tpu.core_type<tc>, window_params = [{transform_indices = @transform_0, window_bounds = array<i64: 16, 16>}, {pipeline_mode = #tpu.pipeline_mode<synchronous>, transform_indices = @transform_1, window_bounds = array<i64: 16, 128>}, {pipeline_mode = #tpu.pipeline_mode<synchronous>, transform_indices = @transform_2, window_bounds = array<i64: 1, 128>}, {pipeline_mode = #tpu.pipeline_mode<synchronous>, transform_indices = @transform_3, window_bounds = array<i64: 128, 128>}, {pipeline_mode = #tpu.pipeline_mode<synchronous>, transform_indices = @transform_4, window_bounds = array<i64: 1, 128>}, {pipeline_mode = #tpu.pipeline_mode<synchronous>, transform_indices = @transform_5, window_bounds = array<i64: 128, 128>}, {pipeline_mode = #tpu.pipeline_mode<synchronous>, transform_indices = @transform_6, window_bounds = array<i64: 1, 128>}, {transform_indices = @transform_7, window_bounds = array<i64: 16, 128>}]} {
    %c0 = arith.constant 0 : index
    %c0_0 = arith.constant 0 : index
    %0 = vector.load %arg1[%c0, %c0_0] : memref<16x16xf32, #tpu.memory_space<vmem>>, vector<16x16xf32>
    %1 = arith.truncf %0 : vector<16x16xf32> to vector<16x16xbf16>
    %c0_1 = arith.constant 0 : index
    %c0_2 = arith.constant 0 : index
    %2 = vector.load %arg2[%c0_1, %c0_2] : memref<16x128xbf16, #tpu.memory_space<vmem>>, vector<16x128xbf16>
    %cst = arith.constant dense<0.000000e+00> : vector<16x128xf32>
    %3 = tpu.matmul %1, %2, %cst {dimension_numbers = #tpu.dot_dimension_numbers<[1], [0], [0], [1], [0, 0, 1, 1], [], []>} : vector<16x16xbf16>, vector<16x128xbf16>, vector<16x128xf32> -> vector<16x128xf32>
    %c0_3 = arith.constant 0 : index
    %c0_4 = arith.constant 0 : index
    %4 = vector.load %arg3[%c0_3, %c0_4] : memref<1x128xf32, #tpu.memory_space<vmem>>, vector<1x128xf32>
    %5 = vector.broadcast %4 : vector<1x128xf32> to vector<16x128xf32>
    %6 = arith.addf %3, %5 : vector<16x128xf32>
    %cst_5 = arith.constant 0.000000e+00 : f32
    %7 = vector.broadcast %cst_5 : f32 to vector<16x128xf32>
    %8 = arith.maximumf %6, %7 : vector<16x128xf32>
    %9 = arith.truncf %8 : vector<16x128xf32> to vector<16x128xbf16>
    %c0_6 = arith.constant 0 : index
    %c0_7 = arith.constant 0 : index
    %10 = vector.load %arg4[%c0_6, %c0_7] : memref<128x128xbf16, #tpu.memory_space<vmem>>, vector<128x128xbf16>
    %cst_8 = arith.constant dense<0.000000e+00> : vector<16x128xf32>
    %11 = tpu.matmul %9, %10, %cst_8 {dimension_numbers = #tpu.dot_dimension_numbers<[1], [0], [0], [1], [0, 0, 1, 1], [], []>} : vector<16x128xbf16>, vector<128x128xbf16>, vector<16x128xf32> -> vector<16x128xf32>
    %c0_9 = arith.constant 0 : index
    %c0_10 = arith.constant 0 : index
    %12 = vector.load %arg5[%c0_9, %c0_10] : memref<1x128xf32, #tpu.memory_space<vmem>>, vector<1x128xf32>
    %13 = vector.broadcast %12 : vector<1x128xf32> to vector<16x128xf32>
    %14 = arith.addf %11, %13 : vector<16x128xf32>
    %cst_11 = arith.constant 0.000000e+00 : f32
    %15 = vector.broadcast %cst_11 : f32 to vector<16x128xf32>
    %16 = arith.maximumf %14, %15 : vector<16x128xf32>
    %17 = arith.truncf %16 : vector<16x128xf32> to vector<16x128xbf16>
    %c0_12 = arith.constant 0 : index
    %c0_13 = arith.constant 0 : index
    %18 = vector.load %arg6[%c0_12, %c0_13] : memref<128x128xbf16, #tpu.memory_space<vmem>>, vector<128x128xbf16>
    %cst_14 = arith.constant dense<0.000000e+00> : vector<16x128xf32>
    %19 = tpu.matmul %17, %18, %cst_14 {dimension_numbers = #tpu.dot_dimension_numbers<[1], [0], [0], [1], [0, 0, 1, 1], [], []>} : vector<16x128xbf16>, vector<128x128xbf16>, vector<16x128xf32> -> vector<16x128xf32>
    %c0_15 = arith.constant 0 : index
    %c0_16 = arith.constant 0 : index
    %20 = vector.load %arg7[%c0_15, %c0_16] : memref<1x128xf32, #tpu.memory_space<vmem>>, vector<1x128xf32>
    %21 = vector.broadcast %20 : vector<1x128xf32> to vector<16x128xf32>
    %22 = arith.addf %19, %21 : vector<16x128xf32>
    %23 = arith.truncf %22 : vector<16x128xf32> to vector<16x128xbf16>
    %c0_17 = arith.constant 0 : index
    %c0_18 = arith.constant 0 : index
    %24 = vector.load %arg8[%c0_17, %c0_18] : memref<16x128xbf16, #tpu.memory_space<vmem>>, vector<16x128xbf16>
    tpu.vector_store %arg8[%c0_17, %c0_18], %23 {strides = array<i32>} : memref<16x128xbf16, #tpu.memory_space<vmem>>, vector<16x128xbf16>,
    return
  }
  func.func @transform_0(%arg0: i32) -> (i32, i32) {
    %c0_i32 = arith.constant 0 : i32
    %c0_i32_0 = arith.constant 0 : i32
    return %arg0, %c0_i32 : i32, i32
  }
  func.func @transform_1(%arg0: i32) -> (i32, i32) {
    %c0_i32 = arith.constant 0 : i32
    %c0_i32_0 = arith.constant 0 : i32
    %c0_i32_1 = arith.constant 0 : i32
    return %c0_i32, %c0_i32_0 : i32, i32
  }
  func.func @transform_2(%arg0: i32) -> (i32, i32) {
    %c0_i32 = arith.constant 0 : i32
    %c0_i32_0 = arith.constant 0 : i32
    %c0_i32_1 = arith.constant 0 : i32
    return %c0_i32, %c0_i32_0 : i32, i32
  }
  func.func @transform_3(%arg0: i32) -> (i32, i32) {
    %c0_i32 = arith.constant 0 : i32
    %c0_i32_0 = arith.constant 0 : i32
    %c0_i32_1 = arith.constant 0 : i32
    return %c0_i32, %c0_i32_0 : i32, i32
  }
  func.func @transform_4(%arg0: i32) -> (i32, i32) {
    %c0_i32 = arith.constant 0 : i32
    %c0_i32_0 = arith.constant 0 : i32
    %c0_i32_1 = arith.constant 0 : i32
    return %c0_i32, %c0_i32_0 : i32, i32
  }
  func.func @transform_5(%arg0: i32) -> (i32, i32) {
    %c0_i32 = arith.constant 0 : i32
    %c0_i32_0 = arith.constant 0 : i32
    %c0_i32_1 = arith.constant 0 : i32
    return %c0_i32, %c0_i32_0 : i32, i32
  }
  func.func @transform_6(%arg0: i32) -> (i32, i32) {
    %c0_i32 = arith.constant 0 : i32
    %c0_i32_0 = arith.constant 0 : i32
    %c0_i32_1 = arith.constant 0 : i32
    return %c0_i32, %c0_i32_0 : i32, i32
  }
  func.func @transform_7(%arg0: i32) -> (i32, i32) {
    %c0_i32 = arith.constant 0 : i32
    %c0_i32_0 = arith.constant 0 : i32
    return %arg0, %c0_i32 : i32, i32
  }
}

</mosaic_0001>

<llo_original>
// kernel: _dqn_forward_padded.1
$region0: #{_dqn_forward_padded.1}
  #allocation0 [shape = 'u32[]', space=smem, size = 0x4, offset = 0x4, fixed_abs, tag = 'smem constant byte address 0x4 - core index']
  #allocation1 [shape = 'u32[144,128]{1,0:T(1,128)}', space=vmem, size = 0x12000, scoped, tag = 'internal scratch']
  %s0 = inlined_call_operand.hbm [shape: f32[16,16], index: 0, kind: input, shape index: {}]
  %s1 = inlined_call_operand.vmem [shape: bf16[16,128], index: 1, kind: input, shape index: {}]
  %s2 = inlined_call_operand.vmem [shape: f32[1,128], index: 2, kind: input, shape index: {}]
  %s3 = inlined_call_operand.hbm [shape: bf16[128,128], index: 3, kind: input, shape index: {}]
  %s4 = inlined_call_operand.vmem [shape: f32[1,128], index: 4, kind: input, shape index: {}]
  %s5 = inlined_call_operand.hbm [shape: bf16[128,128], index: 5, kind: input, shape index: {}]
  %s6 = inlined_call_operand.vmem [shape: f32[1,128], index: 6, kind: input, shape index: {}]
  %s7 = inlined_call_operand.hbm [shape: bf16[16,128], index: 7, kind: output, shape index: {}]
  %s8 = sld [smem:[#allocation0]]
  $region50: #{_dqn_forward_padded.1} parent=0
    _
  %s10 = ssub.s32 1, %s8
  %s11 = scalar_select 0, %s10, %s8
  $region1: #{_dqn_forward_padded.1} parent=0
    #allocation2 [shape = 'u8[8192]{0}', space=vmem, size = 0x2000, scoped, tag = 'input window, operand 0, single buffered']
    #allocation3 [shape = 's32[1]{0}', space=sflag, size = 0x4, scoped, tag = 'scoped memory for _dqn_forward_padded.1']
    #allocation4 [shape = 's32[1]{0}', space=sflag, size = 0x4, scoped, tag = 'scoped memory for _dqn_forward_padded.1']
    #allocation5 [shape = 'u8[32768]{0}', space=vmem, size = 0x8000, scoped, tag = 'input window, operand 3, single buffered']
    #allocation6 [shape = 's32[1]{0}', space=sflag, size = 0x4, scoped, tag = 'scoped memory for _dqn_forward_padded.1']
    #allocation7 [shape = 'u8[32768]{0}', space=vmem, size = 0x8000, scoped, tag = 'input window, operand 5, single buffered']
    #allocation8 [shape = 'u8[4096]{0}', space=vmem, size = 0x1000, scoped, tag = 'output window, operand 0, single buffered']
    %12 = vsyncpa [#allocation3], 0
    %13 = vsyncpa [#allocation6], 0
    %14 = vsyncpa [#allocation4], 0
    // Predicated region
    $region2: #{_dqn_forward_padded.1} parent=1 // pred_check
      _
    $region3: #{_dqn_forward_padded.1} parent=1 // pred_check_branch
      %16 = sbr.rel (0) target = $region5
    $region4: #{_dqn_forward_padded.1} parent=1 // pred_region
      %s18 = ssub.s32 256, 256
      %19 = vsyncadd [#allocation3], %s18
      %s20 = sshll.u32 [#allocation2], 4
      %s21 = int_to_ptr.vmem [resolvable:$true] %s20
      %26 = dma.hbm_to_vmem [thread:$0]  %s0, 256, %s21, [#allocation3], 128, 128, 8
    $region5: #{_dqn_forward_padded.1} parent=1 // pred_fallthru
      _
    // Predicated region
    $region6: #{_dqn_forward_padded.1} parent=1 // pred_check
      _
    $region7: #{_dqn_forward_padded.1} parent=1 // pred_check_branch
      %28 = sbr.rel (0) target = $region9
    $region8: #{_dqn_forward_padded.1} parent=1 // pred_region
      _
    $region9: #{_dqn_forward_padded.1} parent=1 // pred_fallthru
      _
    // Predicated region
    $region10: #{_dqn_forward_padded.1} parent=1 // pred_check
      _
    $region11: #{_dqn_forward_padded.1} parent=1 // pred_check_branch
      %30 = sbr.rel (0) target = $region13
    $region12: #{_dqn_forward_padded.1} parent=1 // pred_region
      _
    $region13: #{_dqn_forward_padded.1} parent=1 // pred_fallthru
      _
    // Predicated region
    $region14: #{_dqn_forward_padded.1} parent=1 // pred_check
      _
    $region15: #{_dqn_forward_padded.1} parent=1 // pred_check_branch
      %32 = sbr.rel (0) target = $region17
    $region16: #{_dqn_forward_padded.1} parent=1 // pred_region
      %s34 = ssub.s32 1024, 1024
      %35 = vsyncadd [#allocation6], %s34
      %s36 = sshll.u32 [#allocation5], 4
      %s37 = int_to_ptr.vmem [resolvable:$true] %s36
      %42 = dma.hbm_to_vmem [thread:$0]  %s3, 1024, %s37, [#allocation6], 64, 64, 4
    $region17: #{_dqn_forward_padded.1} parent=1 // pred_fallthru
      _
    // Predicated region
    $region18: #{_dqn_forward_padded.1} parent=1 // pred_check
      _
    $region19: #{_dqn_forward_padded.1} parent=1 // pred_check_branch
      %44 = sbr.rel (0) target = $region21
    $region20: #{_dqn_forward_padded.1} parent=1 // pred_region
      _
    $region21: #{_dqn_forward_padded.1} parent=1 // pred_fallthru
      _
    // Predicated region
    $region22: #{_dqn_forward_padded.1} parent=1 // pred_check
      _
    $region23: #{_dqn_forward_padded.1} parent=1 // pred_check_branch
      %46 = sbr.rel (0) target = $region25
    $region24: #{_dqn_forward_padded.1} parent=1 // pred_region
      %s48 = ssub.s32 1024, 1024
      %49 = vsyncadd [#allocation6], %s48
      %s50 = sshll.u32 [#allocation7], 4
      %s51 = int_to_ptr.vmem [resolvable:$true] %s50
      %56 = dma.hbm_to_vmem [thread:$0]  %s5, 1024, %s51, [#allocation6], 64, 64, 4
    $region25: #{_dqn_forward_padded.1} parent=1 // pred_fallthru
      _
    // Predicated region
    $region26: #{_dqn_forward_padded.1} parent=1 // pred_check
      _
    $region27: #{_dqn_forward_padded.1} parent=1 // pred_check_branch
      %58 = sbr.rel (0) target = $region29
    $region28: #{_dqn_forward_padded.1} parent=1 // pred_region
      _
    $region29: #{_dqn_forward_padded.1} parent=1 // pred_fallthru
      _
    // Predicated region
    $region30: #{_dqn_forward_padded.1} parent=1 // pred_check
      _
    $region31: #{_dqn_forward_padded.1} parent=1 // pred_check_branch
      %60 = sbr.rel (0) target = $region33
    $region32: #{_dqn_forward_padded.1} parent=1 // pred_region
      %61 = dma.done [#allocation3], 256
    $region33: #{_dqn_forward_padded.1} parent=1 // pred_fallthru
      _
    // Predicated region
    $region34: #{_dqn_forward_padded.1} parent=1 // pred_check
      _
    $region35: #{_dqn_forward_padded.1} parent=1 // pred_check_branch
      %63 = sbr.rel (0) target = $region37
    $region36: #{_dqn_forward_padded.1} parent=1 // pred_region
      %64 = dma.done [#allocation6], 1024
    $region37: #{_dqn_forward_padded.1} parent=1 // pred_fallthru
      _
    // Predicated region
    $region38: #{_dqn_forward_padded.1} parent=1 // pred_check
      _
    $region39: #{_dqn_forward_padded.1} parent=1 // pred_check_branch
      %66 = sbr.rel (0) target = $region41
    $region40: #{_dqn_forward_padded.1} parent=1 // pred_region
      %67 = dma.done [#allocation6], 1024
    $region41: #{_dqn_forward_padded.1} parent=1 // pred_fallthru
      _
    %v69 = vld [vmem:[#allocation2] sm:$0xff]
    %v70 = vld [vmem:[#allocation2 + $0x8] sm:$0xff]
    %v71 = vpack.c.bf16 %v70, %v69
    %v72 = vld [vmem:[%s1] sm:$0xf]
    %v73 = vld [vmem:[%s1 + $0x4] sm:$0xf]
    %v74 = vld [vmem:[%s2] sm:$0x1]
    %v76 = vlaneseq
    %v77 = vshrl.u32 %v76, 7
    %v78 = vsub.s32 0, %v77
    %v79 = vrot.slane %v74, %v78
    %v83 = vunpack.c.l.b16 %v72
    %v84 = vunpack.c.l.b16 %v73
    %v85 = vpack.c.b16 %v84, %v83
    %vm87 = vcmask 130048
    %v89 = vsel %vm87, %v71, 0
    %91 = vmatprep.subr.bf16.mxu0 0
    %92 = vmatpush1.bf16.msra.mxu0 %v85
    %93 = vmatprep.subr.bf16.mxu0 0
    %94 = vmatpush1.bf16.msra.mxu0 0
    %95 = vmatprep.subr.bf16.mxu0 0
    %96 = vmatpush1.bf16.msra.mxu0 0
    %97 = vmatprep.subr.bf16.mxu0 0
    %98 = vmatpush1.bf16.msra.mxu0 0
    %99 = vmatprep.subr.bf16.mxu0 0
    %100 = vmatpush1.bf16.msra.mxu0 0
    %101 = vmatprep.subr.bf16.mxu0 0
    %102 = vmatpush1.bf16.msra.mxu0 0
    %103 = vmatprep.subr.bf16.mxu0 0
    %104 = vmatpush1.bf16.msra.mxu0 0
    %105 = vmatprep.subr.bf16.mxu0 0
    %106 = vmatpush1.bf16.msra.mxu0 0
    %107 = vmatprep.subr.bf16.mxu0 0
    %108 = vmatpush1.bf16.msra.mxu0 0
    %109 = vmatprep.subr.bf16.mxu0 0
    %110 = vmatpush1.bf16.msra.mxu0 0
    %111 = vmatprep.subr.bf16.mxu0 0
    %112 = vmatpush1.bf16.msra.mxu0 0
    %113 = vmatprep.subr.bf16.mxu0 0
    %114 = vmatpush1.bf16.msra.mxu0 0
    %115 = vmatprep.subr.bf16.mxu0 0
    %116 = vmatpush1.bf16.msra.mxu0 0
    %117 = vmatprep.subr.bf16.mxu0 0
    %118 = vmatpush1.bf16.msra.mxu0 0
    %119 = vmatprep.subr.bf16.mxu0 0
    %120 = vmatpush1.bf16.msra.mxu0 0
    %121 = vmatprep.subr.bf16.mxu0 0
    %122 = vmatpush1.bf16.msra.mxu0 0
    %123 = vmatprep.mubr.bf16.mxu0 0
    %124 = vmatmul.mubr.bf16.gmra.mrb[0].mxu0 %v89
    %v125 = vpop.f32.mrb[0].mxu0
    %v126 = vadd.f32 %v79, %v125
    %v127 = vpop.f32.mrb[0].mxu0
    %v128 = vpop.f32.mrb[0].mxu0
    %v129 = vadd.f32 %v79, %v128
    %v130 = vpop.f32.mrb[0].mxu0
    %131 = vdwg.mxu0
    %v132 = vmax.f32 %v126, 0.0
    %v133 = vmax.f32 %v129, 0.0
    %v134 = vpack.c.bf16 %v133, %v132
    %v135 = vld [vmem:[#allocation5] sm:$0xf]
    %v136 = vld [vmem:[#allocation5 + $0x4] sm:$0xf]
    %v137 = vld [vmem:[#allocation5 + $0x8] sm:$0xf]
    %v138 = vld [vmem:[#allocation5 + $0xc] sm:$0xf]
    %v139 = vld [vmem:[#allocation5 + $0x10] sm:$0xf]
    %v140 = vld [vmem:[#allocation5 + $0x14] sm:$0xf]
    %v141 = vld [vmem:[#allocation5 + $0x18] sm:$0xf]
    %v142 = vld [vmem:[#allocation5 + $0x1c] sm:$0xf]
    %v143 = vld [vmem:[#allocation5 + $0x20] sm:$0xf]
    %v144 = vld [vmem:[#allocation5 + $0x24] sm:$0xf]
    %v145 = vld [vmem:[#allocation5 + $0x28] sm:$0xf]
    %v146 = vld [vmem:[#allocation5 + $0x2c] sm:$0xf]
    %v147 = vld [vmem:[#allocation5 + $0x30] sm:$0xf]
    %v148 = vld [vmem:[#allocation5 + $0x34] sm:$0xf]
    %v149 = vld [vmem:[#allocation5 + $0x38] sm:$0xf]
    %v150 = vld [vmem:[#allocation5 + $0x3c] sm:$0xf]
    %v151 = vld [vmem:[%s4] sm:$0x1]
    %v153 = vlaneseq
    %v154 = vshrl.u32 %v153, 7
    %v155 = vsub.s32 0, %v154
    %v156 = vrot.slane %v151, %v155
    %v174 = vunpack.c.l.b16 %v135
    %v175 = vunpack.c.l.b16 %v136
    %v176 = vunpack.c.l.b16 %v137
    %v177 = vunpack.c.l.b16 %v138
    %v178 = vunpack.c.l.b16 %v139
    %v179 = vunpack.c.l.b16 %v140
    %v180 = vunpack.c.l.b16 %v141
    %v181 = vunpack.c.l.b16 %v142
    %v182 = vunpack.c.l.b16 %v143
    %v183 = vunpack.c.l.b16 %v144
    %v184 = vunpack.c.l.b16 %v145
    %v185 = vunpack.c.l.b16 %v146
    %v186 = vunpack.c.l.b16 %v147
    %v187 = vunpack.c.l.b16 %v148
    %v188 = vunpack.c.l.b16 %v149
    %v189 = vunpack.c.l.b16 %v150
    %v190 = vpack.c.b16 %v175, %v174
    %v191 = vpack.c.b16 %v177, %v176
    %v192 = vpack.c.b16 %v179, %v178
    %v193 = vpack.c.b16 %v181, %v180
    %v194 = vpack.c.b16 %v183, %v182
    %v195 = vpack.c.b16 %v185, %v184
    %v196 = vpack.c.b16 %v187, %v186
    %v197 = vpack.c.b16 %v189, %v188
    %206 = vmatprep.subr.bf16.mxu0 0
    %207 = vmatpush1.bf16.msra.mxu0 %v190
    %208 = vmatprep.subr.bf16.mxu0 0
    %209 = vmatpush1.bf16.msra.mxu0 %v191
    %210 = vmatprep.subr.bf16.mxu0 0
    %211 = vmatpush1.bf16.msra.mxu0 %v192
    %212 = vmatprep.subr.bf16.mxu0 0
    %213 = vmatpush1.bf16.msra.mxu0 %v193
    %214 = vmatprep.subr.bf16.mxu0 0
    %215 = vmatpush1.bf16.msra.mxu0 %v194
    %216 = vmatprep.subr.bf16.mxu0 0
    %217 = vmatpush1.bf16.msra.mxu0 %v195
    %218 = vmatprep.subr.bf16.mxu0 0
    %219 = vmatpush1.bf16.msra.mxu0 %v196
    %220 = vmatprep.subr.bf16.mxu0 0
    %221 = vmatpush1.bf16.msra.mxu0 %v197
    %222 = vmatprep.subr.bf16.mxu0 0
    %223 = vmatpush1.bf16.msra.mxu0 0
    %224 = vmatprep.subr.bf16.mxu0 0
    %225 = vmatpush1.bf16.msra.mxu0 0
    %226 = vmatprep.subr.bf16.mxu0 0
    %227 = vmatpush1.bf16.msra.mxu0 0
    %228 = vmatprep.subr.bf16.mxu0 0
    %229 = vmatpush1.bf16.msra.mxu0 0
    %230 = vmatprep.subr.bf16.mxu0 0
    %231 = vmatpush1.bf16.msra.mxu0 0
    %232 = vmatprep.subr.bf16.mxu0 0
    %233 = vmatpush1.bf16.msra.mxu0 0
    %234 = vmatprep.subr.bf16.mxu0 0
    %235 = vmatpush1.bf16.msra.mxu0 0
    %236 = vmatprep.subr.bf16.mxu0 0
    %237 = vmatpush1.bf16.msra.mxu0 0
    %238 = vmatprep.mubr.bf16.mxu0 0
    %239 = vmatmul.mubr.bf16.gmra.mrb[0].mxu0 %v134
    %v240 = vpop.f32.mrb[0].mxu0
    %v241 = vadd.f32 %v156, %v240
    %v242 = vpop.f32.mrb[0].mxu0
    %v243 = vpop.f32.mrb[0].mxu0
    %v244 = vadd.f32 %v156, %v243
    %v245 = vpop.f32.mrb[0].mxu0
    %246 = vdwg.mxu0
    %v247 = vmax.f32 %v241, 0.0
    %v248 = vmax.f32 %v244, 0.0
    %v249 = vpack.c.bf16 %v248, %v247
    %v250 = vld [vmem:[#allocation7] sm:$0xf]
    %v251 = vld [vmem:[#allocation7 + $0x4] sm:$0xf]
    %v252 = vld [vmem:[#allocation7 + $0x8] sm:$0xf]
    %v253 = vld [vmem:[#allocation7 + $0xc] sm:$0xf]
    %v254 = vld [vmem:[#allocation7 + $0x10] sm:$0xf]
    %v255 = vld [vmem:[#allocation7 + $0x14] sm:$0xf]
    %v256 = vld [vmem:[#allocation7 + $0x18] sm:$0xf]
    %v257 = vld [vmem:[#allocation7 + $0x1c] sm:$0xf]
    %v258 = vld [vmem:[#allocation7 + $0x20] sm:$0xf]
    %v259 = vld [vmem:[#allocation7 + $0x24] sm:$0xf]
    %v260 = vld [vmem:[#allocation7 + $0x28] sm:$0xf]
    %v261 = vld [vmem:[#allocation7 + $0x2c] sm:$0xf]
    %v262 = vld [vmem:[#allocation7 + $0x30] sm:$0xf]
    %v263 = vld [vmem:[#allocation7 + $0x34] sm:$0xf]
    %v264 = vld [vmem:[#allocation7 + $0x38] sm:$0xf]
    %v265 = vld [vmem:[#allocation7 + $0x3c] sm:$0xf]
    %v266 = vld [vmem:[%s6] sm:$0x1]
    %v268 = vlaneseq
    %v269 = vshrl.u32 %v268, 7
    %v270 = vsub.s32 0, %v269
    %v271 = vrot.slane %v266, %v270
    %v289 = vunpack.c.l.b16 %v250
    %v290 = vunpack.c.l.b16 %v251
    %v291 = vunpack.c.l.b16 %v252
    %v292 = vunpack.c.l.b16 %v253
    %v293 = vunpack.c.l.b16 %v254
    %v294 = vunpack.c.l.b16 %v255
    %v295 = vunpack.c.l.b16 %v256
    %v296 = vunpack.c.l.b16 %v257
    %v297 = vunpack.c.l.b16 %v258
    %v298 = vunpack.c.l.b16 %v259
    %v299 = vunpack.c.l.b16 %v260
    %v300 = vunpack.c.l.b16 %v261
    %v301 = vunpack.c.l.b16 %v262
    %v302 = vunpack.c.l.b16 %v263
    %v303 = vunpack.c.l.b16 %v264
    %v304 = vunpack.c.l.b16 %v265
    %v305 = vpack.c.b16 %v290, %v289
    %v306 = vpack.c.b16 %v292, %v291
    %v307 = vpack.c.b16 %v294, %v293
    %v308 = vpack.c.b16 %v296, %v295
    %v309 = vpack.c.b16 %v298, %v297
    %v310 = vpack.c.b16 %v300, %v299
    %v311 = vpack.c.b16 %v302, %v301
    %v312 = vpack.c.b16 %v304, %v303
    %321 = vmatprep.subr.bf16.mxu0 0
    %322 = vmatpush1.bf16.msra.mxu0 %v305
    %323 = vmatprep.subr.bf16.mxu0 0
    %324 = vmatpush1.bf16.msra.mxu0 %v306
    %325 = vmatprep.subr.bf16.mxu0 0
    %326 = vmatpush1.bf16.msra.mxu0 %v307
    %327 = vmatprep.subr.bf16.mxu0 0
    %328 = vmatpush1.bf16.msra.mxu0 %v308
    %329 = vmatprep.subr.bf16.mxu0 0
    %330 = vmatpush1.bf16.msra.mxu0 %v309
    %331 = vmatprep.subr.bf16.mxu0 0
    %332 = vmatpush1.bf16.msra.mxu0 %v310
    %333 = vmatprep.subr.bf16.mxu0 0
    %334 = vmatpush1.bf16.msra.mxu0 %v311
    %335 = vmatprep.subr.bf16.mxu0 0
    %336 = vmatpush1.bf16.msra.mxu0 %v312
    %337 = vmatprep.subr.bf16.mxu0 0
    %338 = vmatpush1.bf16.msra.mxu0 0
    %339 = vmatprep.subr.bf16.mxu0 0
    %340 = vmatpush1.bf16.msra.mxu0 0
    %341 = vmatprep.subr.bf16.mxu0 0
    %342 = vmatpush1.bf16.msra.mxu0 0
    %343 = vmatprep.subr.bf16.mxu0 0
    %344 = vmatpush1.bf16.msra.mxu0 0
    %345 = vmatprep.subr.bf16.mxu0 0
    %346 = vmatpush1.bf16.msra.mxu0 0
    %347 = vmatprep.subr.bf16.mxu0 0
    %348 = vmatpush1.bf16.msra.mxu0 0
    %349 = vmatprep.subr.bf16.mxu0 0
    %350 = vmatpush1.bf16.msra.mxu0 0
    %351 = vmatprep.subr.bf16.mxu0 0
    %352 = vmatpush1.bf16.msra.mxu0 0
    %353 = vmatprep.mubr.bf16.mxu0 0
    %354 = vmatmul.mubr.bf16.gmra.mrb[0].mxu0 %v249
    %v355 = vpop.f32.mrb[0].mxu0
    %v356 = vadd.f32 %v271, %v355
    %v357 = vpop.f32.mrb[0].mxu0
    %v358 = vpop.f32.mrb[0].mxu0
    %v359 = vadd.f32 %v271, %v358
    %v360 = vpop.f32.mrb[0].mxu0
    %361 = vdwg.mxu0
    %v362 = vpack.c.bf16 %v359, %v356
    %v364 = vunpack.c.l.b16 %v362
    %v365 = vunpack.c.h.b16 %v362
    %v366 = vpack.c.b16 %v364, %v364
    %v367 = vpack.c.b16 %v365, %v365
    %370 = vst [vmem:[#allocation8] sm:$0xf] %v366
    %371 = vst [vmem:[#allocation8 + $0x4] sm:$0xf] %v367
    // Predicated region
    $region42: #{_dqn_forward_padded.1} parent=1 // pred_check
      _
    $region43: #{_dqn_forward_padded.1} parent=1 // pred_check_branch
      %373 = sbr.rel (0) target = $region45
    $region44: #{_dqn_forward_padded.1} parent=1 // pred_region
      %s375 = ssub.s32 128, 128
      %376 = vsyncadd [#allocation4], %s375
      %s377 = sshll.u32 [#allocation8], 4
      %s378 = int_to_ptr.vmem [resolvable:$true] %s377
      %383 = dma.vmem_to_hbm [thread:$0]  %s378, 128, %s7, [#allocation4], 64, 64, 4
    $region45: #{_dqn_forward_padded.1} parent=1 // pred_fallthru
      _
    // Predicated region
    $region46: #{_dqn_forward_padded.1} parent=1 // pred_check
      _
    $region47: #{_dqn_forward_padded.1} parent=1 // pred_check_branch
      %385 = sbr.rel (0) target = $region49
    $region48: #{_dqn_forward_padded.1} parent=1 // pred_region
      %386 = dma.done [#allocation4], 128
    $region49: #{_dqn_forward_padded.1} parent=1 // pred_fallthru
      _
    %387 = vsyncpa [#allocation3], 1
    %388 = vsyncpa [#allocation6], 1
    %389 = vsyncpa [#allocation4], 1

// kernel: _dqn_forward_padded.1
$region0: #{_dqn_forward_padded.1}
  #allocation0 [shape = 'u32[]', space=smem, size = 0x4, offset = 0x4, fixed_abs, tag = 'smem constant byte address 0x4 - core index']
  #allocation1 [shape = 'u32[144,128]{1,0:T(1,128)}', space=vmem, size = 0x12000, scoped, tag = 'internal scratch']
  %s0 = inlined_call_operand.hbm [shape: f32[16,16], index: 0, kind: input, shape index: {}]
  %s1 = inlined_call_operand.vmem [shape: bf16[16,128], index: 1, kind: input, shape index: {}]
  %s2 = inlined_call_operand.vmem [shape: f32[1,128], index: 2, kind: input, shape index: {}]
  %s3 = inlined_call_operand.hbm [shape: bf16[128,128], index: 3, kind: input, shape index: {}]
  %s4 = inlined_call_operand.vmem [shape: f32[1,128], index: 4, kind: input, shape index: {}]
  %s5 = inlined_call_operand.hbm [shape: bf16[128,128], index: 5, kind: input, shape index: {}]
  %s6 = inlined_call_operand.vmem [shape: f32[1,128], index: 6, kind: input, shape index: {}]
  %s7 = inlined_call_operand.hbm [shape: bf16[16,128], index: 7, kind: output, shape index: {}]
  %s8 = sld [smem:[#allocation0]]
  $region50: #{_dqn_forward_padded.1} parent=0
    _
  %s10 = ssub.s32 1, %s8
  %s11 = scalar_select 0, %s10, %s8
  $region1: #{_dqn_forward_padded.1} parent=0
    #allocation2 [shape = 'u8[8192]{0}', space=vmem, size = 0x2000, scoped, tag = 'input window, operand 0, single buffered']
    #allocation3 [shape = 's32[1]{0}', space=sflag, size = 0x4, scoped, tag = 'scoped memory for _dqn_forward_padded.1']
    #allocation4 [shape = 's32[1]{0}', space=sflag, size = 0x4, scoped, tag = 'scoped memory for _dqn_forward_padded.1']
    #allocation5 [shape = 'u8[32768]{0}', space=vmem, size = 0x8000, scoped, tag = 'input window, operand 3, single buffered']
    #allocation6 [shape = 's32[1]{0}', space=sflag, size = 0x4, scoped, tag = 'scoped memory for _dqn_forward_padded.1']
    #allocation7 [shape = 'u8[32768]{0}', space=vmem, size = 0x8000, scoped, tag = 'input window, operand 5, single buffered']
    #allocation8 [shape = 'u8[4096]{0}', space=vmem, size = 0x1000, scoped, tag = 'output window, operand 0, single buffered']
    %12 = vsyncpa [#allocation3], 0
    %13 = vsyncpa [#allocation6], 0
    %14 = vsyncpa [#allocation4], 0
    // Predicated region
    $region2: #{_dqn_forward_padded.1} parent=1 // pred_check
      _
    $region3: #{_dqn_forward_padded.1} parent=1 // pred_check_branch
      %16 = sbr.rel (0) target = $region5
    $region4: #{_dqn_forward_padded.1} parent=1 // pred_region
      %s18 = ssub.s32 256, 256
      %19 = vsyncadd [#allocation3], %s18
      %s20 = sshll.u32 [#allocation2], 4
      %s21 = int_to_ptr.vmem [resolvable:$true] %s20
      %26 = dma.hbm_to_vmem [thread:$0]  %s0, 256, %s21, [#allocation3], 128, 128, 8
    $region5: #{_dqn_forward_padded.1} parent=1 // pred_fallthru
      _
    // Predicated region
    $region6: #{_dqn_forward_padded.1} parent=1 // pred_check
      _
    $region7: #{_dqn_forward_padded.1} parent=1 // pred_check_branch
      %28 = sbr.rel (0) target = $region9
    $region8: #{_dqn_forward_padded.1} parent=1 // pred_region
      _
    $region9: #{_dqn_forward_padded.1} parent=1 // pred_fallthru
      _
    // Predicated region
    $region10: #{_dqn_forward_padded.1} parent=1 // pred_check
      _
    $region11: #{_dqn_forward_padded.1} parent=1 // pred_check_branch
      %30 = sbr.rel (0) target = $region13
    $region12: #{_dqn_forward_padded.1} parent=1 // pred_region
      _
    $region13: #{_dqn_forward_padded.1} parent=1 // pred_fallthru
      _
    // Predicated region
    $region14: #{_dqn_forward_padded.1} parent=1 // pred_check
      _
    $region15: #{_dqn_forward_padded.1} parent=1 // pred_check_branch
      %32 = sbr.rel (0) target = $region17
    $region16: #{_dqn_forward_padded.1} parent=1 // pred_region
      %s34 = ssub.s32 1024, 1024
      %35 = vsyncadd [#allocation6], %s34
      %s36 = sshll.u32 [#allocation5], 4
      %s37 = int_to_ptr.vmem [resolvable:$true] %s36
      %42 = dma.hbm_to_vmem [thread:$0]  %s3, 1024, %s37, [#allocation6], 64, 64, 4
    $region17: #{_dqn_forward_padded.1} parent=1 // pred_fallthru
      _
    // Predicated region
    $region18: #{_dqn_forward_padded.1} parent=1 // pred_check
      _
    $region19: #{_dqn_forward_padded.1} parent=1 // pred_check_branch
      %44 = sbr.rel (0) target = $region21
    $region20: #{_dqn_forward_padded.1} parent=1 // pred_region
      _
    $region21: #{_dqn_forward_padded.1} parent=1 // pred_fallthru
      _
    // Predicated region
    $region22: #{_dqn_forward_padded.1} parent=1 // pred_check
      _
    $region23: #{_dqn_forward_padded.1} parent=1 // pred_check_branch
      %46 = sbr.rel (0) target = $region25
    $region24: #{_dqn_forward_padded.1} parent=1 // pred_region
      %s48 = ssub.s32 1024, 1024
      %49 = vsyncadd [#allocation6], %s48
      %s50 = sshll.u32 [#allocation7], 4
      %s51 = int_to_ptr.vmem [resolvable:$true] %s50
      %56 = dma.hbm_to_vmem [thread:$0]  %s5, 1024, %s51, [#allocation6], 64, 64, 4
    $region25: #{_dqn_forward_padded.1} parent=1 // pred_fallthru
      _
    // Predicated region
    $region26: #{_dqn_forward_padded.1} parent=1 // pred_check
      _
    $region27: #{_dqn_forward_padded.1} parent=1 // pred_check_branch
      %58 = sbr.rel (0) target = $region29
    $region28: #{_dqn_forward_padded.1} parent=1 // pred_region
      _
    $region29: #{_dqn_forward_padded.1} parent=1 // pred_fallthru
      _
    // Predicated region
    $region30: #{_dqn_forward_padded.1} parent=1 // pred_check
      _
    $region31: #{_dqn_forward_padded.1} parent=1 // pred_check_branch
      %60 = sbr.rel (0) target = $region33
    $region32: #{_dqn_forward_padded.1} parent=1 // pred_region
      %61 = dma.done [#allocation3], 256
    $region33: #{_dqn_forward_padded.1} parent=1 // pred_fallthru
      _
    // Predicated region
    $region34: #{_dqn_forward_padded.1} parent=1 // pred_check
      _
    $region35: #{_dqn_forward_padded.1} parent=1 // pred_check_branch
      %63 = sbr.rel (0) target = $region37
    $region36: #{_dqn_forward_padded.1} parent=1 // pred_region
      %64 = dma.done [#allocation6], 1024
    $region37: #{_dqn_forward_padded.1} parent=1 // pred_fallthru
      _
    // Predicated region
    $region38: #{_dqn_forward_padded.1} parent=1 // pred_check
      _
    $region39: #{_dqn_forward_padded.1} parent=1 // pred_check_branch
      %66 = sbr.rel (0) target = $region41
    $region40: #{_dqn_forward_padded.1} parent=1 // pred_region
      %67 = dma.done [#allocation6], 1024
    $region41: #{_dqn_forward_padded.1} parent=1 // pred_fallthru
      _
    %v69 = vld [vmem:[#allocation2] sm:$0xff]
    %v70 = vld [vmem:[#allocation2 + $0x8] sm:$0xff]
    %v71 = vpack.c.bf16 %v70, %v69
    %v72 = vld [vmem:[%s1] sm:$0xf]
    %v73 = vld [vmem:[%s1 + $0x4] sm:$0xf]
    %v74 = vld [vmem:[%s2] sm:$0x1]
    %v76 = vlaneseq
    %v77 = vshrl.u32 %v76, 7
    %v78 = vsub.s32 0, %v77
    %v79 = vrot.slane %v74, %v78
    %v83 = vunpack.c.l.b16 %v72
    %v84 = vunpack.c.l.b16 %v73
    %v85 = vpack.c.b16 %v84, %v83
    %vm87 = vcmask 130048
    %v89 = vsel %vm87, %v71, 0
    %91 = vmatprep.subr.bf16.mxu0 0
    %92 = vmatpush1.bf16.msra.mxu0 %v85
    %93 = vmatprep.subr.bf16.mxu0 0
    %94 = vmatpush1.bf16.msra.mxu0 0
    %95 = vmatprep.subr.bf16.mxu0 0
    %96 = vmatpush1.bf16.msra.mxu0 0
    %97 = vmatprep.subr.bf16.mxu0 0
    %98 = vmatpush1.bf16.msra.mxu0 0
    %99 = vmatprep.subr.bf16.mxu0 0
    %100 = vmatpush1.bf16.msra.mxu0 0
    %101 = vmatprep.subr.bf16.mxu0 0
    %102 = vmatpush1.bf16.msra.mxu0 0
    %103 = vmatprep.subr.bf16.mxu0 0
    %104 = vmatpush1.bf16.msra.mxu0 0
    %105 = vmatprep.subr.bf16.mxu0 0
    %106 = vmatpush1.bf16.msra.mxu0 0
    %107 = vmatprep.subr.bf16.mxu0 0
    %108 = vmatpush1.bf16.msra.mxu0 0
    %109 = vmatprep.subr.bf16.mxu0 0
    %110 = vmatpush1.bf16.msra.mxu0 0
    %111 = vmatprep.subr.bf16.mxu0 0
    %112 = vmatpush1.bf16.msra.mxu0 0
    %113 = vmatprep.subr.bf16.mxu0 0
    %114 = vmatpush1.bf16.msra.mxu0 0
    %115 = vmatprep.subr.bf16.mxu0 0
    %116 = vmatpush1.bf16.msra.mxu0 0
    %117 = vmatprep.subr.bf16.mxu0 0
    %118 = vmatpush1.bf16.msra.mxu0 0
    %119 = vmatprep.subr.bf16.mxu0 0
    %120 = vmatpush1.bf16.msra.mxu0 0
    %121 = vmatprep.subr.bf16.mxu0 0
    %122 = vmatpush1.bf16.msra.mxu0 0
    %123 = vmatprep.mubr.bf16.mxu0 0
    %124 = vmatmul.mubr.bf16.gmra.mrb[0].mxu0 %v89
    %v125 = vpop.f32.mrb[0].mxu0
    %v126 = vadd.f32 %v79, %v125
    %v127 = vpop.f32.mrb[0].mxu0
    %v128 = vpop.f32.mrb[0].mxu0
    %v129 = vadd.f32 %v79, %v128
    %v130 = vpop.f32.mrb[0].mxu0
    %131 = vdwg.mxu0
    %v132 = vmax.f32 %v126, 0.0
    %v133 = vmax.f32 %v129, 0.0
    %v134 = vpack.c.bf16 %v133, %v132
    %v135 = vld [vmem:[#allocation5] sm:$0xf]
    %v136 = vld [vmem:[#allocation5 + $0x4] sm:$0xf]
    %v137 = vld [vmem:[#allocation5 + $0x8] sm:$0xf]
    %v138 = vld [vmem:[#allocation5 + $0xc] sm:$0xf]
    %v139 = vld [vmem:[#allocation5 + $0x10] sm:$0xf]
    %v140 = vld [vmem:[#allocation5 + $0x14] sm:$0xf]
    %v141 = vld [vmem:[#allocation5 + $0x18] sm:$0xf]
    %v142 = vld [vmem:[#allocation5 + $0x1c] sm:$0xf]
    %v143 = vld [vmem:[#allocation5 + $0x20] sm:$0xf]
    %v144 = vld [vmem:[#allocation5 + $0x24] sm:$0xf]
    %v145 = vld [vmem:[#allocation5 + $0x28] sm:$0xf]
    %v146 = vld [vmem:[#allocation5 + $0x2c] sm:$0xf]
    %v147 = vld [vmem:[#allocation5 + $0x30] sm:$0xf]
    %v148 = vld [vmem:[#allocation5 + $0x34] sm:$0xf]
    %v149 = vld [vmem:[#allocation5 + $0x38] sm:$0xf]
    %v150 = vld [vmem:[#allocation5 + $0x3c] sm:$0xf]
    %v151 = vld [vmem:[%s4] sm:$0x1]
    %v153 = vlaneseq
    %v154 = vshrl.u32 %v153, 7
    %v155 = vsub.s32 0, %v154
    %v156 = vrot.slane %v151, %v155
    %v174 = vunpack.c.l.b16 %v135
    %v175 = vunpack.c.l.b16 %v136
    %v176 = vunpack.c.l.b16 %v137
    %v177 = vunpack.c.l.b16 %v138
    %v178 = vunpack.c.l.b16 %v139
    %v179 = vunpack.c.l.b16 %v140
    %v180 = vunpack.c.l.b16 %v141
    %v181 = vunpack.c.l.b16 %v142
    %v182 = vunpack.c.l.b16 %v143
    %v183 = vunpack.c.l.b16 %v144
    %v184 = vunpack.c.l.b16 %v145
    %v185 = vunpack.c.l.b16 %v146
    %v186 = vunpack.c.l.b16 %v147
    %v187 = vunpack.c.l.b16 %v148
    %v188 = vunpack.c.l.b16 %v149
    %v189 = vunpack.c.l.b16 %v150
    %v190 = vpack.c.b16 %v175, %v174
    %v191 = vpack.c.b16 %v177, %v176
    %v192 = vpack.c.b16 %v179, %v178
    %v193 = vpack.c.b16 %v181, %v180
    %v194 = vpack.c.b16 %v183, %v182
    %v195 = vpack.c.b16 %v185, %v184
    %v196 = vpack.c.b16 %v187, %v186
    %v197 = vpack.c.b16 %v189, %v188
    %206 = vmatprep.subr.bf16.mxu0 0
    %207 = vmatpush1.bf16.msra.mxu0 %v190
    %208 = vmatprep.subr.bf16.mxu0 0
    %209 = vmatpush1.bf16.msra.mxu0 %v191
    %210 = vmatprep.subr.bf16.mxu0 0
    %211 = vmatpush1.bf16.msra.mxu0 %v192
    %212 = vmatprep.subr.bf16.mxu0 0
    %213 = vmatpush1.bf16.msra.mxu0 %v193
    %214 = vmatprep.subr.bf16.mxu0 0
    %215 = vmatpush1.bf16.msra.mxu0 %v194
    %216 = vmatprep.subr.bf16.mxu0 0
    %217 = vmatpush1.bf16.msra.mxu0 %v195
    %218 = vmatprep.subr.bf16.mxu0 0
    %219 = vmatpush1.bf16.msra.mxu0 %v196
    %220 = vmatprep.subr.bf16.mxu0 0
    %221 = vmatpush1.bf16.msra.mxu0 %v197
    %222 = vmatprep.subr.bf16.mxu0 0
    %223 = vmatpush1.bf16.msra.mxu0 0
    %224 = vmatprep.subr.bf16.mxu0 0
    %225 = vmatpush1.bf16.msra.mxu0 0
    %226 = vmatprep.subr.bf16.mxu0 0
    %227 = vmatpush1.bf16.msra.mxu0 0
    %228 = vmatprep.subr.bf16.mxu0 0
    %229 = vmatpush1.bf16.msra.mxu0 0
    %230 = vmatprep.subr.bf16.mxu0 0
    %231 = vmatpush1.bf16.msra.mxu0 0
    %232 = vmatprep.subr.bf16.mxu0 0
    %233 = vmatpush1.bf16.msra.mxu0 0
    %234 = vmatprep.subr.bf16.mxu0 0
    %235 = vmatpush1.bf16.msra.mxu0 0
    %236 = vmatprep.subr.bf16.mxu0 0
    %237 = vmatpush1.bf16.msra.mxu0 0
    %238 = vmatprep.mubr.bf16.mxu0 0
    %239 = vmatmul.mubr.bf16.gmra.mrb[0].mxu0 %v134
    %v240 = vpop.f32.mrb[0].mxu0
    %v241 = vadd.f32 %v156, %v240
    %v242 = vpop.f32.mrb[0].mxu0
    %v243 = vpop.f32.mrb[0].mxu0
    %v244 = vadd.f32 %v156, %v243
    %v245 = vpop.f32.mrb[0].mxu0
    %246 = vdwg.mxu0
    %v247 = vmax.f32 %v241, 0.0
    %v248 = vmax.f32 %v244, 0.0
    %v249 = vpack.c.bf16 %v248, %v247
    %v250 = vld [vmem:[#allocation7] sm:$0xf]
    %v251 = vld [vmem:[#allocation7 + $0x4] sm:$0xf]
    %v252 = vld [vmem:[#allocation7 + $0x8] sm:$0xf]
    %v253 = vld [vmem:[#allocation7 + $0xc] sm:$0xf]
    %v254 = vld [vmem:[#allocation7 + $0x10] sm:$0xf]
    %v255 = vld [vmem:[#allocation7 + $0x14] sm:$0xf]
    %v256 = vld [vmem:[#allocation7 + $0x18] sm:$0xf]
    %v257 = vld [vmem:[#allocation7 + $0x1c] sm:$0xf]
    %v258 = vld [vmem:[#allocation7 + $0x20] sm:$0xf]
    %v259 = vld [vmem:[#allocation7 + $0x24] sm:$0xf]
    %v260 = vld [vmem:[#allocation7 + $0x28] sm:$0xf]
    %v261 = vld [vmem:[#allocation7 + $0x2c] sm:$0xf]
    %v262 = vld [vmem:[#allocation7 + $0x30] sm:$0xf]
    %v263 = vld [vmem:[#allocation7 + $0x34] sm:$0xf]
    %v264 = vld [vmem:[#allocation7 + $0x38] sm:$0xf]
    %v265 = vld [vmem:[#allocation7 + $0x3c] sm:$0xf]
    %v266 = vld [vmem:[%s6] sm:$0x1]
    %v268 = vlaneseq
    %v269 = vshrl.u32 %v268, 7
    %v270 = vsub.s32 0, %v269
    %v271 = vrot.slane %v266, %v270
    %v289 = vunpack.c.l.b16 %v250
    %v290 = vunpack.c.l.b16 %v251
    %v291 = vunpack.c.l.b16 %v252
    %v292 = vunpack.c.l.b16 %v253
    %v293 = vunpack.c.l.b16 %v254
    %v294 = vunpack.c.l.b16 %v255
    %v295 = vunpack.c.l.b16 %v256
    %v296 = vunpack.c.l.b16 %v257
    %v297 = vunpack.c.l.b16 %v258
    %v298 = vunpack.c.l.b16 %v259
    %v299 = vunpack.c.l.b16 %v260
    %v300 = vunpack.c.l.b16 %v261
    %v301 = vunpack.c.l.b16 %v262
    %v302 = vunpack.c.l.b16 %v263
    %v303 = vunpack.c.l.b16 %v264
    %v304 = vunpack.c.l.b16 %v265
    %v305 = vpack.c.b16 %v290, %v289
    %v306 = vpack.c.b16 %v292, %v291
    %v307 = vpack.c.b16 %v294, %v293
    %v308 = vpack.c.b16 %v296, %v295
    %v309 = vpack.c.b16 %v298, %v297
    %v310 = vpack.c.b16 %v300, %v299
    %v311 = vpack.c.b16 %v302, %v301
    %v312 = vpack.c.b16 %v304, %v303
    %321 = vmatprep.subr.bf16.mxu0 0
    %322 = vmatpush1.bf16.msra.mxu0 %v305
    %323 = vmatprep.subr.bf16.mxu0 0
    %324 = vmatpush1.bf16.msra.mxu0 %v306
    %325 = vmatprep.subr.bf16.mxu0 0
    %326 = vmatpush1.bf16.msra.mxu0 %v307
    %327 = vmatprep.subr.bf16.mxu0 0
    %328 = vmatpush1.bf16.msra.mxu0 %v308
    %329 = vmatprep.subr.bf16.mxu0 0
    %330 = vmatpush1.bf16.msra.mxu0 %v309
    %331 = vmatprep.subr.bf16.mxu0 0
    %332 = vmatpush1.bf16.msra.mxu0 %v310
    %333 = vmatprep.subr.bf16.mxu0 0
    %334 = vmatpush1.bf16.msra.mxu0 %v311
    %335 = vmatprep.subr.bf16.mxu0 0
    %336 = vmatpush1.bf16.msra.mxu0 %v312
    %337 = vmatprep.subr.bf16.mxu0 0
    %338 = vmatpush1.bf16.msra.mxu0 0
    %339 = vmatprep.subr.bf16.mxu0 0
    %340 = vmatpush1.bf16.msra.mxu0 0
    %341 = vmatprep.subr.bf16.mxu0 0
    %342 = vmatpush1.bf16.msra.mxu0 0
    %343 = vmatprep.subr.bf16.mxu0 0
    %344 = vmatpush1.bf16.msra.mxu0 0
    %345 = vmatprep.subr.bf16.mxu0 0
    %346 = vmatpush1.bf16.msra.mxu0 0
    %347 = vmatprep.subr.bf16.mxu0 0
    %348 = vmatpush1.bf16.msra.mxu0 0
    %349 = vmatprep.subr.bf16.mxu0 0
    %350 = vmatpush1.bf16.msra.mxu0 0
    %351 = vmatprep.subr.bf16.mxu0 0
    %352 = vmatpush1.bf16.msra.mxu0 0
    %353 = vmatprep.mubr.bf16.mxu0 0
    %354 = vmatmul.mubr.bf16.gmra.mrb[0].mxu0 %v249
    %v355 = vpop.f32.mrb[0].mxu0
    %v356 = vadd.f32 %v271, %v355
    %v357 = vpop.f32.mrb[0].mxu0
    %v358 = vpop.f32.mrb[0].mxu0
    %v359 = vadd.f32 %v271, %v358
    %v360 = vpop.f32.mrb[0].mxu0
    %361 = vdwg.mxu0
    %v362 = vpack.c.bf16 %v359, %v356
    %v364 = vunpack.c.l.b16 %v362
    %v365 = vunpack.c.h.b16 %v362
    %v366 = vpack.c.b16 %v364, %v364
    %v367 = vpack.c.b16 %v365, %v365
    %370 = vst [vmem:[#allocation8] sm:$0xf] %v366
    %371 = vst [vmem:[#allocation8 + $0x4] sm:$0xf] %v367
    // Predicated region
    $region42: #{_dqn_forward_padded.1} parent=1 // pred_check
      _
    $region43: #{_dqn_forward_padded.1} parent=1 // pred_check_branch
      %373 = sbr.rel (0) target = $region45
    $region44: #{_dqn_forward_padded.1} parent=1 // pred_region
      %s375 = ssub.s32 128, 128
      %376 = vsyncadd [#allocation4], %s375
      %s377 = sshll.u32 [#allocation8], 4
      %s378 = int_to_ptr.vmem [resolvable:$true] %s377
      %383 = dma.vmem_to_hbm [thread:$0]  %s378, 128, %s7, [#allocation4], 64, 64, 4
    $region45: #{_dqn_forward_padded.1} parent=1 // pred_fallthru
      _
    // Predicated region
    $region46: #{_dqn_forward_padded.1} parent=1 // pred_check
      _
    $region47: #{_dqn_forward_padded.1} parent=1 // pred_check_branch
      %385 = sbr.rel (0) target = $region49
    $region48: #{_dqn_forward_padded.1} parent=1 // pred_region
      %386 = dma.done [#allocation4], 128
    $region49: #{_dqn_forward_padded.1} parent=1 // pred_fallthru
      _
    %387 = vsyncpa [#allocation3], 1
    %388 = vsyncpa [#allocation6], 1
    %389 = vsyncpa [#allocation4], 1

</llo_original>
